<compile_context>
chip_gen: v7x
topology: tpu7x:2x2x1
jax: 0.10.0
libtpu: 0.0.40
codegen_flags: <defaults>
</compile_context>

<pallas_src>
import functools

import jax
import jax.numpy as jnp
from jax import lax
from jax.experimental import pallas as pl
from jax.experimental.pallas import tpu as pltpu

_LANE = 128
_QUANTUM = 8 * _LANE           # one (8, 128) f32 vreg worth of elements
_SUB_ROWS = 256                # rows per in-kernel sub-chunk (32 vregs/input)


@functools.lru_cache(maxsize=1)
def _chip_config():
    """(num_tensorcores, max_tile_rows) chosen from the attached TPU."""
    try:
        kind = jax.devices()[0].device_kind.lower()
    except Exception:
        kind = ""
    # 2 TensorCores per chip only on v7x; elsewhere a size-2 "parallel" axis
    # is just a serial loop with a wasted duplicate block.
    ncores = 2 if "v7" in kind else 1
    # 8192 rows -> 4 MiB/input/buffer (16 MiB total double-buffered), inside
    # the 32 MiB default scoped-VMEM on v6e/v7x.  Stay at 4096 rows (8 MiB
    # total) on v5e / unknown chips so the 16 MiB default limit is never hit.
    max_rows = 8192 if ("v7" in kind or "v6" in kind) else 4096
    return ncores, max_rows


def _make_dice_kernel(tile_rows, blocks_per_core, rows_valid, needs_mask):
    """Builds the kernel with all trace-time constants closed over."""
    # Sub-chunk the tile so live intermediates stay bounded (no full-tile
    # temporaries for astype / x*t / x+t).  Small inputs (tile_rows not a
    # multiple of 256) are a single grid step anyway -> one chunk is fine.
    sub_rows = _SUB_ROWS if tile_rows % _SUB_ROWS == 0 else tile_rows
    n_sub = tile_rows // sub_rows
    unroll = n_sub if n_sub < 8 else 8

    def kernel(x_ref, t_ref, out_ref):
        c = pl.program_id(0)   # core split axis ("parallel")
        i = pl.program_id(1)   # streaming reduction axis ("arbitrary")

        @pl.when(i == 0)
        def _():
            out_ref[...] = jnp.zeros_like(out_ref)

        zero = jnp.zeros((8, _LANE), jnp.float32)

        def accumulate(masked, start_row):
            def body(j, carry):
                prod_acc, both_acc = carry
                r0 = pl.multiple_of(j * sub_rows, sub_rows)
                # f32 accumulation (no-op for f32 inputs; safe on v5e which
                # has no bf16 VPU).
                x = x_ref[pl.ds(r0, sub_rows), :].astype(jnp.float32)
                t = t_ref[pl.ds(r0, sub_rows), :].astype(jnp.float32)
                if masked:
                    # Row-granularity mask: the wrapper zero-pads the flat
                    # array to the 8x128 quantum, so only whole rows past the
                    # real array (OOB tail garbage / clamped duplicate blocks)
                    # need zeroing.
                    row = lax.broadcasted_iota(jnp.int32, (sub_rows, _LANE), 0)
                    valid = (start_row + r0 + row) < rows_valid
                    x = jnp.where(valid, x, 0.0)
                    t = jnp.where(valid, t, 0.0)
                # Fold (sub_rows, 128) down to vreg-shaped (8, 128) partials
                # with pure VPU adds.
                prod_acc = prod_acc + jnp.sum(
                    (x * t).reshape(-1, 8, _LANE), axis=0)
                both_acc = both_acc + jnp.sum(
                    (x + t).reshape(-1, 8, _LANE), axis=0)
                return prod_acc, both_acc

            prod, both = lax.fori_loop(0, n_sub, body, (zero, zero),
                                       unroll=unroll)
            out_ref[0, 0] += prod   # running sum(x * t) partials
            out_ref[0, 1] += both   # running sum(x) + sum(t) partials (fused)

        if needs_mask:
            start_row = (c * blocks_per_core + i) * tile_rows
            is_tail = start_row + tile_rows > rows_valid

            # Hot path: full interior blocks accumulate with zero mask work.
            @pl.when(jnp.logical_not(is_tail))
            def _():
                accumulate(False, start_row)

            # Cold path: tail block and clamped duplicate blocks only.
            @pl.when(is_tail)
            def _():
                accumulate(True, start_row)
        else:
            accumulate(False, 0)

    return kernel


def _dice_partial_sums(x2d, t2d):
    """Returns (ncores, 2, 8, 128) f32 partials: [:, 0]=x*t, [:, 1]=x+t."""
    rows = x2d.shape[0]                      # multiple of 8 by construction
    ncores, max_tile_rows = _chip_config()
    tile_rows = min(max_tile_rows, rows)     # multiple of 8, <= rows
    total_blocks = pl.cdiv(rows, tile_rows)
    blocks_per_core = pl.cdiv(total_blocks, ncores)
    last_block = total_blocks - 1
    # Mask is only needed if the logical iteration space covers more rows
    # than the real array (partial tail block or clamped duplicate blocks).
    needs_mask = ncores * blocks_per_core * tile_rows != rows

    def in_index_map(c, i):
        # Clamp so the DMA window never starts past the array; the in-kernel
        # row mask zeroes clamped (duplicate) blocks and OOB tail rows.
        return (jnp.minimum(c * blocks_per_core + i, last_block), 0)

    kernel = _make_dice_kernel(tile_rows, blocks_per_core, rows, needs_mask)

    # TODO(synk): if an xprof profile on v7x shows only one TensorCore active,
    # switch the leading axis to pltpu.CORE_PARALLEL / an explicit core_map.
    return pl.pallas_call(
        kernel,
        out_shape=jax.ShapeDtypeStruct((ncores, 2, 8, _LANE), jnp.float32),
        grid=(ncores, blocks_per_core),
        in_specs=[
            pl.BlockSpec((tile_rows, _LANE), in_index_map),
            pl.BlockSpec((tile_rows, _LANE), in_index_map),
        ],
        # Output block doubles as the per-core VMEM accumulator: the same
        # block is revisited across the inner (arbitrary) axis.
        out_specs=pl.BlockSpec((1, 2, 8, _LANE), lambda c, i: (c, 0, 0, 0)),
        compiler_params=pltpu.CompilerParams(
            dimension_semantics=("parallel", "arbitrary"),
        ),
    )(x2d, t2d)


@functools.partial(jax.jit, static_argnames=("smooth",))
def dice_loss(inputs, targets, smooth=1.0):
    """Pallas equivalent of DiceLoss.forward(inputs, targets, smooth)."""
    x = inputs.reshape(-1)
    t = targets.reshape(-1)
    n = x.shape[0]

    # Only align to the (8, 128) layout quantum (zero for typical NCHW sizes);
    # tile-boundary tails are masked in-kernel, so there is no padding to the
    # full tile size and no extra HBM pass.
    padded = pl.cdiv(n, _QUANTUM) * _QUANTUM
    pad = padded - n
    if pad:
        x = jnp.pad(x, (0, pad))
        t = jnp.pad(t, (0, pad))

    rows = padded // _LANE
    x2d = x.reshape(rows, _LANE)   # pure reshape of a contiguous array (free)
    t2d = t.reshape(rows, _LANE)

    partials = _dice_partial_sums(x2d, t2d)
    intersection = jnp.sum(partials[:, 0])
    xt_sum = jnp.sum(partials[:, 1])            # == sum(x) + sum(t)

    dice = (2.0 * intersection + smooth) / (xt_sum + smooth)
    return 1.0 - dice                           # keep f32 (accumulation dtype)


def _reference_dice_loss(inputs, targets, smooth=1.0):
    x = inputs.reshape(-1).astype(jnp.float32)
    t = targets.reshape(-1).astype(jnp.float32)
    inter = jnp.sum(x * t)
    dice = (2.0 * inter + smooth) / (jnp.sum(x) + jnp.sum(t) + smooth)
    return 1.0 - dice


if __name__ == "__main__":
    key = jax.random.PRNGKey(0)
    k1, k2 = jax.random.split(key)

    # NCHW-shaped inputs, e.g. sigmoid probabilities vs. binary masks.
    shape = (2, 4, 16, 16)
    inputs = jax.nn.sigmoid(jax.random.normal(k1, shape, dtype=jnp.float32))
    targets = (jax.random.uniform(k2, shape) > 0.5).astype(jnp.float32)

    loss = dice_loss(inputs, targets, smooth=1.0)
    jax.block_until_ready(loss)

    ref = _reference_dice_loss(inputs, targets, smooth=1.0)
    assert jnp.allclose(loss, ref, atol=1e-5, rtol=1e-5), (loss, ref)

    print("KERNEL_OK")
</pallas_src>

<mosaic_0001>
module attributes {stable_mosaic.version = 11 : i64} {
  func.func @kernel(%arg0: i32, %arg1: i32, %arg2: memref<16x128xf32, #tpu.memory_space<vmem>>, %arg3: memref<16x128xf32, #tpu.memory_space<vmem>>, %arg4: memref<1x2x8x128xf32, #tpu.memory_space<vmem>>) attributes {dimension_semantics = [#tpu.dimension_semantics<parallel>, #tpu.dimension_semantics<arbitrary>], iteration_bounds = array<i64: 1, 1>, scalar_prefetch = 0 : i64, scratch_operands = 0 : i64, tpu.core_type = #tpu.core_type<tc>, window_params = [{transform_indices = @transform_0, window_bounds = array<i64: 16, 128>}, {transform_indices = @transform_1, window_bounds = array<i64: 16, 128>}, {transform_indices = @transform_2, window_bounds = array<i64: 1, 2, 8, 128>}]} {
    %c0_i32 = arith.constant 0 : i32
    %0 = arith.cmpi eq, %arg1, %c0_i32 : i32
    %1 = arith.extui %0 : i1 to i32
    %c0_i32_0 = arith.constant 0 : i32
    %2 = arith.cmpi ne, %1, %c0_i32_0 : i32
    scf.if %2 {
      %cst_20 = arith.constant 0.000000e+00 : f32
      %30 = vector.broadcast %cst_20 : f32 to vector<1x2x8x128xf32>
      %c0_21 = arith.constant 0 : index
      %c0_22 = arith.constant 0 : index
      %c0_23 = arith.constant 0 : index
      %c0_24 = arith.constant 0 : index
      %31 = vector.load %arg4[%c0_21, %c0_22, %c0_23, %c0_24] : memref<1x2x8x128xf32, #tpu.memory_space<vmem>>, vector<1x2x8x128xf32>
      tpu.vector_store %arg4[%c0_21, %c0_22, %c0_23, %c0_24], %30 {strides = array<i32>} : memref<1x2x8x128xf32, #tpu.memory_space<vmem>>, vector<1x2x8x128xf32>,
    } else {
    }
    %cst = arith.constant 0.000000e+00 : f32
    %3 = vector.broadcast %cst : f32 to vector<8x128xf32>
    %c0_i32_1 = arith.constant 0 : i32
    %c16_i32 = arith.constant 16 : i32
    %4 = arith.muli %c0_i32_1, %c16_i32 : i32
    %5 = tpu.assume_multiple %4, 16 : i32
    %6 = arith.index_cast %5 : i32 to index
    %c0 = arith.constant 0 : index
    %7 = vector.load %arg2[%6, %c0] : memref<16x128xf32, #tpu.memory_space<vmem>>, vector<16x128xf32>
    %8 = arith.index_cast %5 : i32 to index
    %c0_2 = arith.constant 0 : index
    %9 = vector.load %arg3[%8, %c0_2] : memref<16x128xf32, #tpu.memory_space<vmem>>, vector<16x128xf32>
    %10 = arith.mulf %7, %9 : vector<16x128xf32>
    %11 = vector.shape_cast %10 : vector<16x128xf32> to vector<2x8x128xf32>
    %cst_3 = arith.constant dense<0.000000e+00> : vector<8x128xf32>
    %12 = vector.multi_reduction <add>, %11, %cst_3 [0] : vector<2x8x128xf32> to vector<8x128xf32>
    %13 = arith.addf %3, %12 : vector<8x128xf32>
    %14 = arith.addf %7, %9 : vector<16x128xf32>
    %15 = vector.shape_cast %14 : vector<16x128xf32> to vector<2x8x128xf32>
    %cst_4 = arith.constant dense<0.000000e+00> : vector<8x128xf32>
    %16 = vector.multi_reduction <add>, %15, %cst_4 [0] : vector<2x8x128xf32> to vector<8x128xf32>
    %17 = arith.addf %3, %16 : vector<8x128xf32>
    %c1_i32 = arith.constant 1 : i32
    %c0_5 = arith.constant 0 : index
    %c0_6 = arith.constant 0 : index
    %c0_7 = arith.constant 0 : index
    %c0_8 = arith.constant 0 : index
    %18 = vector.load %arg4[%c0_5, %c0_6, %c0_7, %c0_8] : memref<1x2x8x128xf32, #tpu.memory_space<vmem>>, vector<1x1x8x128xf32>
    %19 = vector.shape_cast %18 : vector<1x1x8x128xf32> to vector<8x128xf32>
    %20 = arith.addf %19, %13 : vector<8x128xf32>
    %c0_9 = arith.constant 0 : index
    %c0_10 = arith.constant 0 : index
    %c0_11 = arith.constant 0 : index
    %c0_12 = arith.constant 0 : index
    %21 = vector.load %arg4[%c0_9, %c0_10, %c0_11, %c0_12] : memref<1x2x8x128xf32, #tpu.memory_space<vmem>>, vector<1x1x8x128xf32>
    %22 = vector.shape_cast %21 : vector<1x1x8x128xf32> to vector<8x128xf32>
    %23 = vector.shape_cast %20 : vector<8x128xf32> to vector<1x1x8x128xf32>
    tpu.vector_store %arg4[%c0_9, %c0_10, %c0_11, %c0_12], %23 {strides = array<i32>} : memref<1x2x8x128xf32, #tpu.memory_space<vmem>>, vector<1x1x8x128xf32>,
    %c0_13 = arith.constant 0 : index
    %c1 = arith.constant 1 : index
    %c0_14 = arith.constant 0 : index
    %c0_15 = arith.constant 0 : index
    %24 = vector.load %arg4[%c0_13, %c1, %c0_14, %c0_15] : memref<1x2x8x128xf32, #tpu.memory_space<vmem>>, vector<1x1x8x128xf32>
    %25 = vector.shape_cast %24 : vector<1x1x8x128xf32> to vector<8x128xf32>
    %26 = arith.addf %25, %17 : vector<8x128xf32>
    %c0_16 = arith.constant 0 : index
    %c1_17 = arith.constant 1 : index
    %c0_18 = arith.constant 0 : index
    %c0_19 = arith.constant 0 : index
    %27 = vector.load %arg4[%c0_16, %c1_17, %c0_18, %c0_19] : memref<1x2x8x128xf32, #tpu.memory_space<vmem>>, vector<1x1x8x128xf32>
    %28 = vector.shape_cast %27 : vector<1x1x8x128xf32> to vector<8x128xf32>
    %29 = vector.shape_cast %26 : vector<8x128xf32> to vector<1x1x8x128xf32>
    tpu.vector_store %arg4[%c0_16, %c1_17, %c0_18, %c0_19], %29 {strides = array<i32>} : memref<1x2x8x128xf32, #tpu.memory_space<vmem>>, vector<1x1x8x128xf32>,
    return
  }
  func.func @transform_0(%arg0: i32, %arg1: i32) -> (i32, i32) {
    %c1_i32 = arith.constant 1 : i32
    %0 = arith.muli %arg0, %c1_i32 : i32
    %1 = arith.addi %0, %arg1 : i32
    %c0_i32 = arith.constant 0 : i32
    %2 = arith.minsi %1, %c0_i32 : i32
    %c0_i32_0 = arith.constant 0 : i32
    %c0_i32_1 = arith.constant 0 : i32
    return %2, %c0_i32_0 : i32, i32
  }
  func.func @transform_1(%arg0: i32, %arg1: i32) -> (i32, i32) {
    %c1_i32 = arith.constant 1 : i32
    %0 = arith.muli %arg0, %c1_i32 : i32
    %1 = arith.addi %0, %arg1 : i32
    %c0_i32 = arith.constant 0 : i32
    %2 = arith.minsi %1, %c0_i32 : i32
    %c0_i32_0 = arith.constant 0 : i32
    %c0_i32_1 = arith.constant 0 : i32
    return %2, %c0_i32_0 : i32, i32
  }
  func.func @transform_2(%arg0: i32, %arg1: i32) -> (i32, i32, i32, i32) {
    %c0_i32 = arith.constant 0 : i32
    %c0_i32_0 = arith.constant 0 : i32
    %c0_i32_1 = arith.constant 0 : i32
    %c0_i32_2 = arith.constant 0 : i32
    return %arg0, %c0_i32, %c0_i32_0, %c0_i32_1 : i32, i32, i32, i32
  }
}

</mosaic_0001>

<llo_original>
// kernel: dice_loss.1
$region0: #{dice_loss.1}
  #allocation0 [shape = 'u32[]', space=smem, size = 0x4, offset = 0x4, fixed_abs, tag = 'smem constant byte address 0x4 - core index']
  #allocation1 [shape = 'u32[144,128]{1,0:T(1,128)}', space=vmem, size = 0x12000, scoped, tag = 'internal scratch']
  %s0 = inlined_call_operand.vmem [shape: f32[16,128], index: 0, kind: input, shape index: {}]
  %s1 = inlined_call_operand.vmem [shape: f32[16,128], index: 1, kind: input, shape index: {}]
  %s2 = inlined_call_operand.vmem [shape: f32[1,2,8,128], index: 2, kind: output, shape index: {}]
  %s3 = sld [smem:[#allocation0]]
  $region22: #{dice_loss.1} parent=0
    _
  %s5 = ssub.s32 1, %s3
  %s6 = scalar_select 0, %s5, %s3
  // Predicated region
  $region2: #{dice_loss.1} parent=0 // pred_check
    _
  $region3: #{dice_loss.1} parent=0 // pred_check_branch
    %8 = sbr.rel (0) target = $region5
  $region4: #{dice_loss.1} parent=0 // pred_region
    %s9 = sadd.s32 0, 0
    %p10 = scmp.lt.s32.totalorder %s9, 0
    %s11 = scalar_select %p10, %s9, 0
    %s12 = smul.u32 2, %s11
    %p13 = scmp.lt.s32.totalorder %s12, 1
    %s14 = scalar_select %p13, %s12, 1
    %s15 = smul.addr %s14, 8
    %s16 = scalar_lea.vmem %s0, %s15
    %s17 = sadd.s32 0, 0
    %p18 = scmp.lt.s32.totalorder %s17, 0
    %s19 = scalar_select %p18, %s17, 0
    %s20 = smul.u32 2, %s19
  $region5: #{dice_loss.1} parent=0 // pred_fallthru
    _
  // Predicated region
  $region6: #{dice_loss.1} parent=0 // pred_check
    _
  $region7: #{dice_loss.1} parent=0 // pred_check_branch
    %22 = sbr.rel (0) target = $region9
  $region8: #{dice_loss.1} parent=0 // pred_region
    %s23 = sadd.s32 0, 0
    %p24 = scmp.lt.s32.totalorder %s23, 0
    %s25 = scalar_select %p24, %s23, 0
    %s26 = smul.u32 2, %s25
    %p27 = scmp.lt.s32.totalorder %s26, 1
    %s28 = scalar_select %p27, %s26, 1
    %s29 = smul.addr %s28, 8
    %s30 = scalar_lea.vmem %s1, %s29
    %s31 = sadd.s32 0, 0
    %p32 = scmp.lt.s32.totalorder %s31, 0
    %s33 = scalar_select %p32, %s31, 0
    %s34 = smul.u32 2, %s33
  $region9: #{dice_loss.1} parent=0 // pred_fallthru
    _
  %s35 = sadd.s32 0, 0
  %p36 = scmp.lt.s32.totalorder %s35, 0
  %s37 = scalar_select %p36, %s35, 0
  %s38 = smul.u32 2, %s37
  %p39 = scmp.lt.s32.totalorder %s38, 1
  %s40 = scalar_select %p39, %s38, 1
  %s41 = smul.addr %s40, 8
  %s42 = scalar_lea.vmem %s0, %s41
  %s43 = sadd.s32 0, 0
  %p44 = scmp.lt.s32.totalorder %s43, 0
  %s45 = scalar_select %p44, %s43, 0
  %s46 = smul.u32 2, %s45
  %p47 = scmp.lt.s32.totalorder %s46, 1
  %s48 = scalar_select %p47, %s46, 1
  %s49 = smul.addr %s48, 8
  %s50 = scalar_lea.vmem %s1, %s49
  %s51 = sadd.s32 0, 0
  %p52 = scmp.lt.s32.totalorder %s51, 0
  %s53 = scalar_select %p52, %s51, 0
  %s54 = smul.u32 2, %s53
  %p55 = scmp.lt.s32.totalorder %s54, 1
  %s56 = scalar_select %p55, %s54, 1
  %s57 = smul.addr %s56, 8
  %s58 = scalar_lea.vmem %s0, %s57
  %s59 = sadd.s32 0, 0
  %p60 = scmp.lt.s32.totalorder %s59, 0
  %s61 = scalar_select %p60, %s59, 0
  %s62 = smul.u32 2, %s61
  %s63 = sadd.s32 0, 0
  %p64 = scmp.lt.s32.totalorder %s63, 0
  %s65 = scalar_select %p64, %s63, 0
  %s66 = smul.u32 2, %s65
  %p67 = scmp.lt.s32.totalorder %s66, 1
  %s68 = scalar_select %p67, %s66, 1
  %s69 = smul.addr %s68, 8
  %s70 = scalar_lea.vmem %s1, %s69
  %s71 = sadd.s32 0, 0
  %p72 = scmp.lt.s32.totalorder %s71, 0
  %s73 = scalar_select %p72, %s71, 0
  %s74 = smul.u32 2, %s73
  %p75 = scmp.eq.s32.totalorder 0, 0
  // Predicated region
  $region10: #{dice_loss.1} parent=0 // pred_check
    %p76 = pneg %p75
  $region11: #{dice_loss.1} parent=0 // pred_check_branch
    %78 = sbr.rel (%p76) target = $region13
  $region12: #{dice_loss.1} parent=0 // pred_region
    %79 = vst [vmem:[%s2] sm:$0xff] 0.0
    %80 = vst [vmem:[%s2 + $0x8] sm:$0xff] 0.0
  $region13: #{dice_loss.1} parent=0 // pred_fallthru
    _
  %v81 = vld [vmem:[%s58] sm:$0xff]
  %v82 = vld [vmem:[%s58 + $0x8] sm:$0xff]
  %v83 = vld [vmem:[%s70] sm:$0xff]
  %v84 = vld [vmem:[%s70 + $0x8] sm:$0xff]
  %v85 = vmul.f32 %v81, %v83
  %v86 = vmul.f32 %v82, %v84
  %v87 = vadd.f32 %v85, %v86
  %v88 = vadd.f32 %v87, 0.0
  %v89 = vadd.f32 %v81, %v83
  %v90 = vadd.f32 %v82, %v84
  %v91 = vadd.f32 %v89, %v90
  %v92 = vadd.f32 %v91, 0.0
  %v93 = vld [vmem:[%s2] sm:$0xff]
  %v94 = vadd.f32 %v93, %v88
  %95 = vst [vmem:[%s2] sm:$0xff] %v94
  %s96 = scalar_lea.vmem %s2, 8
  %v97 = vld [vmem:[%s96] sm:$0xff]
  %v98 = vadd.f32 %v97, %v92
  %99 = vst [vmem:[%s96] sm:$0xff] %v98
  // Predicated region
  $region14: #{dice_loss.1} parent=0 // pred_check
    _
  $region15: #{dice_loss.1} parent=0 // pred_check_branch
    %101 = sbr.rel (0) target = $region17
  $region16: #{dice_loss.1} parent=0 // pred_region
    _
  $region17: #{dice_loss.1} parent=0 // pred_fallthru
    _
  // Predicated region
  $region18: #{dice_loss.1} parent=0 // pred_check
    _
  $region19: #{dice_loss.1} parent=0 // pred_check_branch
    %103 = sbr.rel (0) target = $region21
  $region20: #{dice_loss.1} parent=0 // pred_region
    _
  $region21: #{dice_loss.1} parent=0 // pred_fallthru
    _

</llo_original>
